<compile_context>
chip_gen: v7x
topology: tpu7x:2x2x1
jax: 0.10.0
libtpu: 0.0.40
codegen_flags: <defaults>
</compile_context>

<pallas_src>
import jax
import jax.numpy as jnp
from jax import lax
from jax.experimental import pallas as pl
from jax.experimental.pallas import tpu as pltpu

B = 2        # batch
C = 128      # channels (fixed by the module: Conv1d(128, 128, 1))
N = 128      # number of points (sequence length)
EPS = 1e-5   # PyTorch BatchNorm1d default eps


def base_learner_kernel(x_ref, w_ref, p_ref, o_ref):
    # x_ref: (B, C, N) f32   w_ref: (C, C) f32   p_ref: (C, 2) packed [gamma | beta]
    # o_ref: (B, C, N) f32
    w = w_ref[...]                                                   # (C, C)

    # Pointwise Conv1d as a single 256-wide MXU matmul (bias omitted: BN no-op).
    xc = jnp.concatenate([x_ref[b] for b in range(B)], axis=1)       # (C, B*N)
    y = jnp.dot(w, xc, preferred_element_type=jnp.float32)           # (C, B*N)

    # BatchNorm1d (training mode): biased batch stats over (B, N), single slab pass.
    inv_count = jnp.float32(1.0 / (B * N))
    mean = jnp.sum(y, axis=1, keepdims=True) * inv_count             # (C, 1)
    var = jnp.sum(y * y, axis=1, keepdims=True) * inv_count - mean * mean
    var = jnp.maximum(var, 0.0)          # guard one-pass cancellation -> rsqrt(neg)

    # Fold BN into one affine; rsqrt goes to the EUP slot (effectively free).
    gamma = p_ref[:, 0:1]                                            # (C, 1)
    beta = p_ref[:, 1:2]                                             # (C, 1)
    scale = gamma * lax.rsqrt(var + EPS)
    shift = beta - mean * scale

    # Fused FMA + ReLU over the whole slab: scale/shift broadcast emitted once.
    out = jnp.maximum(y * scale + shift, 0.0)                        # (C, B*N)
    for b in range(B):
        o_ref[b] = out[:, b * N:(b + 1) * N]


def _cost_estimate(num_instances=1):
    return pl.CostEstimate(
        flops=2 * B * C * C * N * num_instances,
        transcendentals=C * num_instances,
        bytes_accessed=4 * (2 * B * C * N + C * C + 2 * C) * num_instances,
    )


def base_learner_forward(x, w, params):
    # Single learner instance: grid-less, whole problem VMEM-resident (~320 KiB).
    vmem = pltpu.MemorySpace.VMEM
    return pl.pallas_call(
        base_learner_kernel,
        out_shape=jax.ShapeDtypeStruct((B, C, N), jnp.float32),
        in_specs=[pl.BlockSpec(memory_space=vmem),
                  pl.BlockSpec(memory_space=vmem),
                  pl.BlockSpec(memory_space=vmem)],
        out_specs=pl.BlockSpec(memory_space=vmem),
        cost_estimate=_cost_estimate(1),
    )(x, w, params)


def base_learner_forward_batched(xs, ws, params):
    # G learner instances (each with its own weights / BN params) in ONE pallas_call.
    # Leading grid axis marked "parallel": amortizes launch/DMA overhead, pipelines
    # the per-instance tiles, and shards across the two TensorCores on v7x.
    G = xs.shape[0]
    return pl.pallas_call(
        base_learner_kernel,
        out_shape=jax.ShapeDtypeStruct((G, B, C, N), jnp.float32),
        grid=(G,),
        in_specs=[
            pl.BlockSpec((None, B, C, N), lambda g: (g, 0, 0, 0)),   # per-instance x
            pl.BlockSpec((None, C, C), lambda g: (g, 0, 0)),         # per-instance w
            pl.BlockSpec((None, C, 2), lambda g: (g, 0, 0)),         # per-instance [gamma|beta]
        ],
        out_specs=pl.BlockSpec((None, B, C, N), lambda g: (g, 0, 0, 0)),
        compiler_params=pltpu.CompilerParams(dimension_semantics=("parallel",)),
        cost_estimate=_cost_estimate(G),
    )(xs, ws, params)


def reference_forward(x, w, bias, gamma, beta):
    # Full PyTorch semantics (including the conv bias, which the kernel omits
    # because it cancels exactly under training-mode BN).
    y = jnp.einsum("oi,bin->bon", w, x,
                   precision=lax.Precision.HIGHEST) + bias[None, :, :]
    mean = jnp.mean(y, axis=(0, 2), keepdims=True)
    var = jnp.mean((y - mean) ** 2, axis=(0, 2), keepdims=True)
    y_hat = (y - mean) * lax.rsqrt(var + EPS)
    return jnp.maximum(y_hat * gamma[None, :, :] + beta[None, :, :], 0.0)


if __name__ == "__main__":
    key = jax.random.PRNGKey(0)
    kx, kw, kb, kg, kbe = jax.random.split(key, 5)

    # --- single-instance path (the module's forward) ---
    x = jax.random.normal(kx, (B, C, N), dtype=jnp.float32)
    # Conv1d weight is (out_ch, in_ch, kernel=1) -> squeeze the kernel dim
    w = jax.random.normal(kw, (C, C), dtype=jnp.float32) * 0.05
    bias = jax.random.normal(kb, (C, 1), dtype=jnp.float32) * 0.05    # no-op under BN
    gamma = 1.0 + 0.1 * jax.random.normal(kg, (C, 1), dtype=jnp.float32)
    beta = 0.1 * jax.random.normal(kbe, (C, 1), dtype=jnp.float32)
    params = jnp.concatenate([gamma, beta], axis=1)                   # one tiny param DMA

    out = jax.block_until_ready(base_learner_forward(x, w, params))
    ref = reference_forward(x, w, bias, gamma, beta)
    assert out.shape == (B, C, N)
    assert jnp.allclose(out, ref, atol=1e-4, rtol=1e-4), "single-instance mismatch"

    # --- instance-batched path (many learners, one gridded parallel call) ---
    G = 4
    kxs, kws, kgs, kbs = jax.random.split(jax.random.PRNGKey(1), 4)
    xs = jax.random.normal(kxs, (G, B, C, N), dtype=jnp.float32)
    ws = jax.random.normal(kws, (G, C, C), dtype=jnp.float32) * 0.05
    gammas = 1.0 + 0.1 * jax.random.normal(kgs, (G, C, 1), dtype=jnp.float32)
    betas = 0.1 * jax.random.normal(kbs, (G, C, 1), dtype=jnp.float32)
    params_g = jnp.concatenate([gammas, betas], axis=2)               # (G, C, 2)
    zero_bias = jnp.zeros((G, C, 1), jnp.float32)

    outs = jax.block_until_ready(base_learner_forward_batched(xs, ws, params_g))
    refs = jax.vmap(reference_forward)(xs, ws, zero_bias, gammas, betas)
    assert outs.shape == (G, B, C, N)
    assert jnp.allclose(outs, refs, atol=1e-4, rtol=1e-4), "batched mismatch"

    print("KERNEL_OK")
</pallas_src>

<mosaic_0001>
module attributes {stable_mosaic.version = 11 : i64} {
  func.func @base_learner_kernel(%arg0: memref<2x128x128xf32, #tpu.memory_space<vmem>>, %arg1: memref<128x128xf32, #tpu.memory_space<vmem>>, %arg2: memref<128x2xf32, #tpu.memory_space<vmem>>, %arg3: memref<2x128x128xf32, #tpu.memory_space<vmem>>) attributes {dimension_semantics = [], scalar_prefetch = 0 : i64, scratch_operands = 0 : i64, tpu.core_type = #tpu.core_type<tc>} {
    %c0 = arith.constant 0 : index
    %c0_0 = arith.constant 0 : index
    %0 = vector.load %arg1[%c0, %c0_0] : memref<128x128xf32, #tpu.memory_space<vmem>>, vector<128x128xf32>
    %c0_1 = arith.constant 0 : index
    %c0_2 = arith.constant 0 : index
    %c0_3 = arith.constant 0 : index
    %1 = vector.load %arg0[%c0_1, %c0_2, %c0_3] : memref<2x128x128xf32, #tpu.memory_space<vmem>>, vector<1x128x128xf32>
    %2 = vector.shape_cast %1 : vector<1x128x128xf32> to vector<128x128xf32>
    %c1 = arith.constant 1 : index
    %c0_4 = arith.constant 0 : index
    %c0_5 = arith.constant 0 : index
    %3 = vector.load %arg0[%c1, %c0_4, %c0_5] : memref<2x128x128xf32, #tpu.memory_space<vmem>>, vector<1x128x128xf32>
    %4 = vector.shape_cast %3 : vector<1x128x128xf32> to vector<128x128xf32>
    %5 = tpu.concatenate %2, %4 in 1 : vector<128x128xf32>, vector<128x128xf32> -> vector<128x256xf32>
    %cst = arith.constant dense<0.000000e+00> : vector<128x256xf32>
    %6 = tpu.matmul %0, %5, %cst {dimension_numbers = #tpu.dot_dimension_numbers<[1], [0], [0], [1], [0, 0, 1, 1], [], []>} : vector<128x128xf32>, vector<128x256xf32>, vector<128x256xf32> -> vector<128x256xf32>
    %cst_6 = arith.constant dense<0.000000e+00> : vector<128xf32>
    %7 = vector.multi_reduction <add>, %6, %cst_6 [1] : vector<128x256xf32> to vector<128xf32>
    %8 = vector.shape_cast %7 : vector<128xf32> to vector<128x1xf32>
    %cst_7 = arith.constant 3.906250e-03 : f32
    %9 = vector.broadcast %cst_7 : f32 to vector<128x1xf32>
    %10 = arith.mulf %8, %9 : vector<128x1xf32>
    %11 = arith.mulf %6, %6 : vector<128x256xf32>
    %cst_8 = arith.constant dense<0.000000e+00> : vector<128xf32>
    %12 = vector.multi_reduction <add>, %11, %cst_8 [1] : vector<128x256xf32> to vector<128xf32>
    %13 = vector.shape_cast %12 : vector<128xf32> to vector<128x1xf32>
    %cst_9 = arith.constant 3.906250e-03 : f32
    %14 = vector.broadcast %cst_9 : f32 to vector<128x1xf32>
    %15 = arith.mulf %13, %14 : vector<128x1xf32>
    %16 = arith.mulf %10, %10 : vector<128x1xf32>
    %17 = arith.subf %15, %16 : vector<128x1xf32>
    %cst_10 = arith.constant 0.000000e+00 : f32
    %18 = vector.broadcast %cst_10 : f32 to vector<128x1xf32>
    %19 = arith.maximumf %17, %18 : vector<128x1xf32>
    %c0_11 = arith.constant 0 : index
    %c0_12 = arith.constant 0 : index
    %20 = vector.load %arg2[%c0_11, %c0_12] : memref<128x2xf32, #tpu.memory_space<vmem>>, vector<128x1xf32>
    %c0_13 = arith.constant 0 : index
    %c1_14 = arith.constant 1 : index
    %21 = vector.load %arg2[%c0_13, %c1_14] : memref<128x2xf32, #tpu.memory_space<vmem>>, vector<128x1xf32>
    %cst_15 = arith.constant 9.99999974E-6 : f32
    %22 = vector.broadcast %cst_15 : f32 to vector<128x1xf32>
    %23 = arith.addf %19, %22 : vector<128x1xf32>
    %24 = math.rsqrt %23 : vector<128x1xf32>
    %25 = arith.mulf %20, %24 : vector<128x1xf32>
    %26 = arith.mulf %10, %25 : vector<128x1xf32>
    %27 = arith.subf %21, %26 : vector<128x1xf32>
    %28 = vector.broadcast %25 : vector<128x1xf32> to vector<128x256xf32>
    %29 = arith.mulf %6, %28 : vector<128x256xf32>
    %30 = vector.broadcast %27 : vector<128x1xf32> to vector<128x256xf32>
    %31 = arith.addf %29, %30 : vector<128x256xf32>
    %cst_16 = arith.constant 0.000000e+00 : f32
    %32 = vector.broadcast %cst_16 : f32 to vector<128x256xf32>
    %33 = arith.maximumf %31, %32 : vector<128x256xf32>
    %34 = vector.extract_strided_slice %33 {offsets = [0, 0], sizes = [128, 128], strides = [1, 1]} : vector<128x256xf32> to vector<128x128xf32>
    %c0_17 = arith.constant 0 : index
    %c0_18 = arith.constant 0 : index
    %c0_19 = arith.constant 0 : index
    %35 = vector.load %arg3[%c0_17, %c0_18, %c0_19] : memref<2x128x128xf32, #tpu.memory_space<vmem>>, vector<1x128x128xf32>
    %36 = vector.shape_cast %35 : vector<1x128x128xf32> to vector<128x128xf32>
    %37 = vector.shape_cast %34 : vector<128x128xf32> to vector<1x128x128xf32>
    tpu.vector_store %arg3[%c0_17, %c0_18, %c0_19], %37 {strides = array<i32>} : memref<2x128x128xf32, #tpu.memory_space<vmem>>, vector<1x128x128xf32>,
    %38 = vector.extract_strided_slice %33 {offsets = [0, 128], sizes = [128, 128], strides = [1, 1]} : vector<128x256xf32> to vector<128x128xf32>
    %c1_20 = arith.constant 1 : index
    %c0_21 = arith.constant 0 : index
    %c0_22 = arith.constant 0 : index
    %39 = vector.load %arg3[%c1_20, %c0_21, %c0_22] : memref<2x128x128xf32, #tpu.memory_space<vmem>>, vector<1x128x128xf32>
    %40 = vector.shape_cast %39 : vector<1x128x128xf32> to vector<128x128xf32>
    %41 = vector.shape_cast %38 : vector<128x128xf32> to vector<1x128x128xf32>
    tpu.vector_store %arg3[%c1_20, %c0_21, %c0_22], %41 {strides = array<i32>} : memref<2x128x128xf32, #tpu.memory_space<vmem>>, vector<1x128x128xf32>,
    return
  }
}

</mosaic_0001>

<llo_original>
// kernel: tpu_custom_call.1
$region0: #{tpu_custom_call.1}
  #allocation0 [shape = 'u32[]', space=smem, size = 0x4, offset = 0x4, fixed_abs, tag = 'smem constant byte address 0x4 - core index']
  #allocation1 [shape = 'u32[144,128]{1,0:T(1,128)}', space=vmem, size = 0x12000, scoped, tag = 'internal scratch']
  %s0 = inlined_call_operand.hbm [shape: f32[2,128,128], index: 0, kind: input, shape index: {}]
  %s1 = inlined_call_operand.vmem [shape: f32[128,128], index: 1, kind: input, shape index: {}]
  %s2 = inlined_call_operand.vmem [shape: f32[128,2], index: 2, kind: input, shape index: {}]
  %s3 = inlined_call_operand.hbm [shape: f32[2,128,128], index: 3, kind: output, shape index: {}]
  %s4 = sld [smem:[#allocation0]]
  $region26: #{tpu_custom_call.1} parent=0
    _
  %s6 = ssub.s32 1, %s4
  %s7 = scalar_select 0, %s6, %s4
  $region1: #{tpu_custom_call.1} parent=0
    #allocation2 [shape = 'u8[131072]{0}', space=vmem, size = 0x20000, scoped, tag = 'input window, operand 0, single buffered']
    #allocation3 [shape = 's32[1]{0}', space=sflag, size = 0x4, scoped, tag = 'scoped memory for tpu_custom_call.1']
    #allocation4 [shape = 's32[1]{0}', space=sflag, size = 0x4, scoped, tag = 'scoped memory for tpu_custom_call.1']
    #allocation5 [shape = 'u8[131072]{0}', space=vmem, size = 0x20000, scoped, tag = 'output window, operand 0, single buffered']
    %8 = vsyncpa [#allocation3], 0
    %9 = vsyncpa [#allocation4], 0
    // Predicated region
    $region2: #{tpu_custom_call.1} parent=1 // pred_check
      _
    $region3: #{tpu_custom_call.1} parent=1 // pred_check_branch
      %11 = sbr.rel (0) target = $region5
    $region4: #{tpu_custom_call.1} parent=1 // pred_region
      %s13 = ssub.s32 4096, 4096
      %14 = vsyncadd [#allocation3], %s13
      %s15 = sshll.u32 [#allocation2], 4
      %s16 = int_to_ptr.vmem [resolvable:$true] %s15
      %21 = dma.hbm_to_vmem [thread:$0]  %s0, 4096, %s16, [#allocation3], 128, 128, 8
    $region5: #{tpu_custom_call.1} parent=1 // pred_fallthru
      _
    // Predicated region
    $region6: #{tpu_custom_call.1} parent=1 // pred_check
      _
    $region7: #{tpu_custom_call.1} parent=1 // pred_check_branch
      %23 = sbr.rel (0) target = $region9
    $region8: #{tpu_custom_call.1} parent=1 // pred_region
      _
    $region9: #{tpu_custom_call.1} parent=1 // pred_fallthru
      _
    // Predicated region
    $region10: #{tpu_custom_call.1} parent=1 // pred_check
      _
    $region11: #{tpu_custom_call.1} parent=1 // pred_check_branch
      %25 = sbr.rel (0) target = $region13
    $region12: #{tpu_custom_call.1} parent=1 // pred_region
      _
    $region13: #{tpu_custom_call.1} parent=1 // pred_fallthru
      _
    // Predicated region
    $region14: #{tpu_custom_call.1} parent=1 // pred_check
      _
    $region15: #{tpu_custom_call.1} parent=1 // pred_check_branch
      %27 = sbr.rel (0) target = $region17
    $region16: #{tpu_custom_call.1} parent=1 // pred_region
      %28 = dma.done [#allocation3], 4096
    $region17: #{tpu_custom_call.1} parent=1 // pred_fallthru
      _
    %v29 = vld [vmem:[%s1] sm:$0xff]
    %v30 = vld [vmem:[%s1 + $0x8] sm:$0xff]
    %v31 = vld [vmem:[%s1 + $0x10] sm:$0xff]
    %v32 = vld [vmem:[%s1 + $0x18] sm:$0xff]
    %v33 = vld [vmem:[%s1 + $0x20] sm:$0xff]
    %v34 = vld [vmem:[%s1 + $0x28] sm:$0xff]
    %v35 = vld [vmem:[%s1 + $0x30] sm:$0xff]
    %v36 = vld [vmem:[%s1 + $0x38] sm:$0xff]
    %v37 = vld [vmem:[%s1 + $0x40] sm:$0xff]
    %v38 = vld [vmem:[%s1 + $0x48] sm:$0xff]
    %v39 = vld [vmem:[%s1 + $0x50] sm:$0xff]
    %v40 = vld [vmem:[%s1 + $0x58] sm:$0xff]
    %v41 = vld [vmem:[%s1 + $0x60] sm:$0xff]
    %v42 = vld [vmem:[%s1 + $0x68] sm:$0xff]
    %v43 = vld [vmem:[%s1 + $0x70] sm:$0xff]
    %v44 = vld [vmem:[%s1 + $0x78] sm:$0xff]
    %v45 = vld [vmem:[#allocation2] sm:$0xff]
    %v46 = vld [vmem:[#allocation2 + $0x8] sm:$0xff]
    %v47 = vld [vmem:[#allocation2 + $0x10] sm:$0xff]
    %v48 = vld [vmem:[#allocation2 + $0x18] sm:$0xff]
    %v49 = vld [vmem:[#allocation2 + $0x20] sm:$0xff]
    %v50 = vld [vmem:[#allocation2 + $0x28] sm:$0xff]
    %v51 = vld [vmem:[#allocation2 + $0x30] sm:$0xff]
    %v52 = vld [vmem:[#allocation2 + $0x38] sm:$0xff]
    %v53 = vld [vmem:[#allocation2 + $0x40] sm:$0xff]
    %v54 = vld [vmem:[#allocation2 + $0x48] sm:$0xff]
    %v55 = vld [vmem:[#allocation2 + $0x50] sm:$0xff]
    %v56 = vld [vmem:[#allocation2 + $0x58] sm:$0xff]
    %v57 = vld [vmem:[#allocation2 + $0x60] sm:$0xff]
    %v58 = vld [vmem:[#allocation2 + $0x68] sm:$0xff]
    %v59 = vld [vmem:[#allocation2 + $0x70] sm:$0xff]
    %v60 = vld [vmem:[#allocation2 + $0x78] sm:$0xff]
    %s61 = scalar_lea.vmem [#allocation2], 128
    %v62 = vld [vmem:[%s61] sm:$0xff]
    %v63 = vld [vmem:[%s61 + $0x8] sm:$0xff]
    %v64 = vld [vmem:[%s61 + $0x10] sm:$0xff]
    %v65 = vld [vmem:[%s61 + $0x18] sm:$0xff]
    %v66 = vld [vmem:[%s61 + $0x20] sm:$0xff]
    %v67 = vld [vmem:[%s61 + $0x28] sm:$0xff]
    %v68 = vld [vmem:[%s61 + $0x30] sm:$0xff]
    %v69 = vld [vmem:[%s61 + $0x38] sm:$0xff]
    %v70 = vld [vmem:[%s61 + $0x40] sm:$0xff]
    %v71 = vld [vmem:[%s61 + $0x48] sm:$0xff]
    %v72 = vld [vmem:[%s61 + $0x50] sm:$0xff]
    %v73 = vld [vmem:[%s61 + $0x58] sm:$0xff]
    %v74 = vld [vmem:[%s61 + $0x60] sm:$0xff]
    %v75 = vld [vmem:[%s61 + $0x68] sm:$0xff]
    %v76 = vld [vmem:[%s61 + $0x70] sm:$0xff]
    %v77 = vld [vmem:[%s61 + $0x78] sm:$0xff]
    %78 = vmatprep.subr.mxu0 %v62
    %79 = vmatpush1.msra.mxu0 %v45
    %80 = vmatprep.subr.mxu0 %v63
    %81 = vmatpush1.msra.mxu0 %v46
    %82 = vmatprep.subr.mxu0 %v64
    %83 = vmatpush1.msra.mxu0 %v47
    %84 = vmatprep.subr.mxu0 %v65
    %85 = vmatpush1.msra.mxu0 %v48
    %86 = vmatprep.subr.mxu0 %v66
    %87 = vmatpush1.msra.mxu0 %v49
    %88 = vmatprep.subr.mxu0 %v67
    %89 = vmatpush1.msra.mxu0 %v50
    %90 = vmatprep.subr.mxu0 %v68
    %91 = vmatpush1.msra.mxu0 %v51
    %92 = vmatprep.subr.mxu0 %v69
    %93 = vmatpush1.msra.mxu0 %v52
    %94 = vmatprep.subr.mxu0 %v70
    %95 = vmatpush1.msra.mxu0 %v53
    %96 = vmatprep.subr.mxu0 %v71
    %97 = vmatpush1.msra.mxu0 %v54
    %98 = vmatprep.subr.mxu0 %v72
    %99 = vmatpush1.msra.mxu0 %v55
    %100 = vmatprep.subr.mxu0 %v73
    %101 = vmatpush1.msra.mxu0 %v56
    %102 = vmatprep.subr.mxu0 %v74
    %103 = vmatpush1.msra.mxu0 %v57
    %104 = vmatprep.subr.mxu0 %v75
    %105 = vmatpush1.msra.mxu0 %v58
    %106 = vmatprep.subr.mxu0 %v76
    %107 = vmatpush1.msra.mxu0 %v59
    %108 = vmatprep.subr.mxu0 %v77
    %109 = vmatpush1.msra.mxu0 %v60
    %110 = vmatprep.subr.mxu0 0.0
    %111 = vmatpush1.msra.mxu0 0.0
    %112 = vmatprep.subr.mxu0 0.0
    %113 = vmatpush1.msra.mxu0 0.0
    %114 = vmatprep.subr.mxu0 0.0
    %115 = vmatpush1.msra.mxu0 0.0
    %116 = vmatprep.subr.mxu0 0.0
    %117 = vmatpush1.msra.mxu0 0.0
    %118 = vmatprep.subr.mxu0 0.0
    %119 = vmatpush1.msra.mxu0 0.0
    %120 = vmatprep.subr.mxu0 0.0
    %121 = vmatpush1.msra.mxu0 0.0
    %122 = vmatprep.subr.mxu0 0.0
    %123 = vmatpush1.msra.mxu0 0.0
    %124 = vmatprep.subr.mxu0 0.0
    %125 = vmatpush1.msra.mxu0 0.0
    %126 = vmatprep.subr.mxu0 0.0
    %127 = vmatpush1.msra.mxu0 0.0
    %128 = vmatprep.subr.mxu0 0.0
    %129 = vmatpush1.msra.mxu0 0.0
    %130 = vmatprep.subr.mxu0 0.0
    %131 = vmatpush1.msra.mxu0 0.0
    %132 = vmatprep.subr.mxu0 0.0
    %133 = vmatpush1.msra.mxu0 0.0
    %134 = vmatprep.subr.mxu0 0.0
    %135 = vmatpush1.msra.mxu0 0.0
    %136 = vmatprep.subr.mxu0 0.0
    %137 = vmatpush1.msra.mxu0 0.0
    %138 = vmatprep.subr.mxu0 0.0
    %139 = vmatpush1.msra.mxu0 0.0
    %140 = vmatprep.subr.mxu0 0.0
    %141 = vmatpush1.msra.mxu0 0.0
    %142 = vmatprep.mubr.f32.mxu0 0.0
    %143 = vmatmul.mubr.f32.gmra.mrb[0].mxu0 %v29
    %v144 = vpop.f32.mrb[0].mxu0
    %v145 = vadd.f32 0.0, %v144
    %v146 = vpop.f32.mrb[0].mxu0
    %v147 = vadd.f32 0.0, %v146
    %148 = vmatprep.mubr.f32.mxu0 0.0
    %149 = vmatmul.mubr.f32.gmra.mrb[0].mxu0 %v30
    %v150 = vpop.f32.mrb[0].mxu0
    %v151 = vadd.f32 0.0, %v150
    %v152 = vpop.f32.mrb[0].mxu0
    %v153 = vadd.f32 0.0, %v152
    %154 = vmatprep.mubr.f32.mxu0 0.0
    %155 = vmatmul.mubr.f32.gmra.mrb[0].mxu0 %v31
    %v156 = vpop.f32.mrb[0].mxu0
    %v157 = vadd.f32 0.0, %v156
    %v158 = vpop.f32.mrb[0].mxu0
    %v159 = vadd.f32 0.0, %v158
    %160 = vmatprep.mubr.f32.mxu0 0.0
    %161 = vmatmul.mubr.f32.gmra.mrb[0].mxu0 %v32
    %v162 = vpop.f32.mrb[0].mxu0
    %v163 = vadd.f32 0.0, %v162
    %v164 = vpop.f32.mrb[0].mxu0
    %v165 = vadd.f32 0.0, %v164
    %166 = vmatprep.mubr.f32.mxu0 0.0
    %167 = vmatmul.mubr.f32.gmra.mrb[0].mxu0 %v33
    %v168 = vpop.f32.mrb[0].mxu0
    %v169 = vadd.f32 0.0, %v168
    %v170 = vpop.f32.mrb[0].mxu0
    %v171 = vadd.f32 0.0, %v170
    %172 = vmatprep.mubr.f32.mxu0 0.0
    %173 = vmatmul.mubr.f32.gmra.mrb[0].mxu0 %v34
    %v174 = vpop.f32.mrb[0].mxu0
    %v175 = vadd.f32 0.0, %v174
    %v176 = vpop.f32.mrb[0].mxu0
    %v177 = vadd.f32 0.0, %v176
    %178 = vmatprep.mubr.f32.mxu0 0.0
    %179 = vmatmul.mubr.f32.gmra.mrb[0].mxu0 %v35
    %v180 = vpop.f32.mrb[0].mxu0
    %v181 = vadd.f32 0.0, %v180
    %v182 = vpop.f32.mrb[0].mxu0
    %v183 = vadd.f32 0.0, %v182
    %184 = vmatprep.mubr.f32.mxu0 0.0
    %185 = vmatmul.mubr.f32.gmra.mrb[0].mxu0 %v36
    %v186 = vpop.f32.mrb[0].mxu0
    %v187 = vadd.f32 0.0, %v186
    %v188 = vpop.f32.mrb[0].mxu0
    %v189 = vadd.f32 0.0, %v188
    %190 = vmatprep.mubr.f32.mxu0 0.0
    %191 = vmatmul.mubr.f32.gmra.mrb[0].mxu0 %v37
    %v192 = vpop.f32.mrb[0].mxu0
    %v193 = vadd.f32 0.0, %v192
    %v194 = vpop.f32.mrb[0].mxu0
    %v195 = vadd.f32 0.0, %v194
    %196 = vmatprep.mubr.f32.mxu0 0.0
    %197 = vmatmul.mubr.f32.gmra.mrb[0].mxu0 %v38
    %v198 = vpop.f32.mrb[0].mxu0
    %v199 = vadd.f32 0.0, %v198
    %v200 = vpop.f32.mrb[0].mxu0
    %v201 = vadd.f32 0.0, %v200
    %202 = vmatprep.mubr.f32.mxu0 0.0
    %203 = vmatmul.mubr.f32.gmra.mrb[0].mxu0 %v39
    %v204 = vpop.f32.mrb[0].mxu0
    %v205 = vadd.f32 0.0, %v204
    %v206 = vpop.f32.mrb[0].mxu0
    %v207 = vadd.f32 0.0, %v206
    %208 = vmatprep.mubr.f32.mxu0 0.0
    %209 = vmatmul.mubr.f32.gmra.mrb[0].mxu0 %v40
    %v210 = vpop.f32.mrb[0].mxu0
    %v211 = vadd.f32 0.0, %v210
    %v212 = vpop.f32.mrb[0].mxu0
    %v213 = vadd.f32 0.0, %v212
    %214 = vmatprep.mubr.f32.mxu0 0.0
    %215 = vmatmul.mubr.f32.gmra.mrb[0].mxu0 %v41
    %v216 = vpop.f32.mrb[0].mxu0
    %v217 = vadd.f32 0.0, %v216
    %v218 = vpop.f32.mrb[0].mxu0
    %v219 = vadd.f32 0.0, %v218
    %220 = vmatprep.mubr.f32.mxu0 0.0
    %221 = vmatmul.mubr.f32.gmra.mrb[0].mxu0 %v42
    %v222 = vpop.f32.mrb[0].mxu0
    %v223 = vadd.f32 0.0, %v222
    %v224 = vpop.f32.mrb[0].mxu0
    %v225 = vadd.f32 0.0, %v224
    %226 = vmatprep.mubr.f32.mxu0 0.0
    %227 = vmatmul.mubr.f32.gmra.mrb[0].mxu0 %v43
    %v228 = vpop.f32.mrb[0].mxu0
    %v229 = vadd.f32 0.0, %v228
    %v230 = vpop.f32.mrb[0].mxu0
    %v231 = vadd.f32 0.0, %v230
    %232 = vmatprep.mubr.f32.mxu0 0.0
    %233 = vmatmul.mubr.f32.gmra.mrb[0].mxu0 %v44
    %v234 = vpop.f32.mrb[0].mxu0
    %v235 = vadd.f32 0.0, %v234
    %v236 = vpop.f32.mrb[0].mxu0
    %v237 = vadd.f32 0.0, %v236
    %238 = vdwg.mxu0
    %v239 = vadd.f32 %v145, %v147
    %240 = vadd.xlane.f32.xlu0 %v239
    %v241 = vpop.xlane.xlu0 %240
    %v242 = vadd.f32 %v151, %v153
    %243 = vadd.xlane.f32.xlu0 %v242
    %v244 = vpop.xlane.xlu0 %243
    %v245 = vadd.f32 %v157, %v159
    %246 = vadd.xlane.f32.xlu0 %v245
    %v247 = vpop.xlane.xlu0 %246
    %v248 = vadd.f32 %v163, %v165
    %249 = vadd.xlane.f32.xlu0 %v248
    %v250 = vpop.xlane.xlu0 %249
    %v251 = vadd.f32 %v169, %v171
    %252 = vadd.xlane.f32.xlu0 %v251
    %v253 = vpop.xlane.xlu0 %252
    %v254 = vadd.f32 %v175, %v177
    %255 = vadd.xlane.f32.xlu0 %v254
    %v256 = vpop.xlane.xlu0 %255
    %v257 = vadd.f32 %v181, %v183
    %258 = vadd.xlane.f32.xlu0 %v257
    %v259 = vpop.xlane.xlu0 %258
    %v260 = vadd.f32 %v187, %v189
    %261 = vadd.xlane.f32.xlu0 %v260
    %v262 = vpop.xlane.xlu0 %261
    %v263 = vadd.f32 %v193, %v195
    %264 = vadd.xlane.f32.xlu0 %v263
    %v265 = vpop.xlane.xlu0 %264
    %v266 = vadd.f32 %v199, %v201
    %267 = vadd.xlane.f32.xlu0 %v266
    %v268 = vpop.xlane.xlu0 %267
    %v269 = vadd.f32 %v205, %v207
    %270 = vadd.xlane.f32.xlu0 %v269
    %v271 = vpop.xlane.xlu0 %270
    %v272 = vadd.f32 %v211, %v213
    %273 = vadd.xlane.f32.xlu0 %v272
    %v274 = vpop.xlane.xlu0 %273
    %v275 = vadd.f32 %v217, %v219
    %276 = vadd.xlane.f32.xlu0 %v275
    %v277 = vpop.xlane.xlu0 %276
    %v278 = vadd.f32 %v223, %v225
    %279 = vadd.xlane.f32.xlu0 %v278
    %v280 = vpop.xlane.xlu0 %279
    %v281 = vadd.f32 %v229, %v231
    %282 = vadd.xlane.f32.xlu0 %v281
    %v283 = vpop.xlane.xlu0 %282
    %v284 = vadd.f32 %v235, %v237
    %285 = vadd.xlane.f32.xlu0 %v284
    %v286 = vpop.xlane.xlu0 %285
    %v287 = vmul.f32 %v241, 0.00390625
    %v288 = vmul.f32 %v244, 0.00390625
    %v289 = vmul.f32 %v247, 0.00390625
    %v290 = vmul.f32 %v250, 0.00390625
    %v291 = vmul.f32 %v253, 0.00390625
    %v292 = vmul.f32 %v256, 0.00390625
    %v293 = vmul.f32 %v259, 0.00390625
    %v294 = vmul.f32 %v262, 0.00390625
    %v295 = vmul.f32 %v265, 0.00390625
    %v296 = vmul.f32 %v268, 0.00390625
    %v297 = vmul.f32 %v271, 0.00390625
    %v298 = vmul.f32 %v274, 0.00390625
    %v299 = vmul.f32 %v277, 0.00390625
    %v300 = vmul.f32 %v280, 0.00390625
    %v301 = vmul.f32 %v283, 0.00390625
    %v302 = vmul.f32 %v286, 0.00390625
    %v303 = vmul.f32 %v145, %v145
    %v304 = vmul.f32 %v147, %v147
    %v305 = vmul.f32 %v151, %v151
    %v306 = vmul.f32 %v153, %v153
    %v307 = vmul.f32 %v157, %v157
    %v308 = vmul.f32 %v159, %v159
    %v309 = vmul.f32 %v163, %v163
    %v310 = vmul.f32 %v165, %v165
    %v311 = vmul.f32 %v169, %v169
    %v312 = vmul.f32 %v171, %v171
    %v313 = vmul.f32 %v175, %v175
    %v314 = vmul.f32 %v177, %v177
    %v315 = vmul.f32 %v181, %v181
    %v316 = vmul.f32 %v183, %v183
    %v317 = vmul.f32 %v187, %v187
    %v318 = vmul.f32 %v189, %v189
    %v319 = vmul.f32 %v193, %v193
    %v320 = vmul.f32 %v195, %v195
    %v321 = vmul.f32 %v199, %v199
    %v322 = vmul.f32 %v201, %v201
    %v323 = vmul.f32 %v205, %v205
    %v324 = vmul.f32 %v207, %v207
    %v325 = vmul.f32 %v211, %v211
    %v326 = vmul.f32 %v213, %v213
    %v327 = vmul.f32 %v217, %v217
    %v328 = vmul.f32 %v219, %v219
    %v329 = vmul.f32 %v223, %v223
    %v330 = vmul.f32 %v225, %v225
    %v331 = vmul.f32 %v229, %v229
    %v332 = vmul.f32 %v231, %v231
    %v333 = vmul.f32 %v235, %v235
    %v334 = vmul.f32 %v237, %v237
    %v335 = vadd.f32 %v303, %v304
    %336 = vadd.xlane.f32.xlu0 %v335
    %v337 = vpop.xlane.xlu0 %336
    %v338 = vadd.f32 %v305, %v306
    %339 = vadd.xlane.f32.xlu0 %v338
    %v340 = vpop.xlane.xlu0 %339
    %v341 = vadd.f32 %v307, %v308
    %342 = vadd.xlane.f32.xlu0 %v341
    %v343 = vpop.xlane.xlu0 %342
    %v344 = vadd.f32 %v309, %v310
    %345 = vadd.xlane.f32.xlu0 %v344
    %v346 = vpop.xlane.xlu0 %345
    %v347 = vadd.f32 %v311, %v312
    %348 = vadd.xlane.f32.xlu0 %v347
    %v349 = vpop.xlane.xlu0 %348
    %v350 = vadd.f32 %v313, %v314
    %351 = vadd.xlane.f32.xlu0 %v350
    %v352 = vpop.xlane.xlu0 %351
    %v353 = vadd.f32 %v315, %v316
    %354 = vadd.xlane.f32.xlu0 %v353
    %v355 = vpop.xlane.xlu0 %354
    %v356 = vadd.f32 %v317, %v318
    %357 = vadd.xlane.f32.xlu0 %v356
    %v358 = vpop.xlane.xlu0 %357
    %v359 = vadd.f32 %v319, %v320
    %360 = vadd.xlane.f32.xlu0 %v359
    %v361 = vpop.xlane.xlu0 %360
    %v362 = vadd.f32 %v321, %v322
    %363 = vadd.xlane.f32.xlu0 %v362
    %v364 = vpop.xlane.xlu0 %363
    %v365 = vadd.f32 %v323, %v324
    %366 = vadd.xlane.f32.xlu0 %v365
    %v367 = vpop.xlane.xlu0 %366
    %v368 = vadd.f32 %v325, %v326
    %369 = vadd.xlane.f32.xlu0 %v368
    %v370 = vpop.xlane.xlu0 %369
    %v371 = vadd.f32 %v327, %v328
    %372 = vadd.xlane.f32.xlu0 %v371
    %v373 = vpop.xlane.xlu0 %372
    %v374 = vadd.f32 %v329, %v330
    %375 = vadd.xlane.f32.xlu0 %v374
    %v376 = vpop.xlane.xlu0 %375
    %v377 = vadd.f32 %v331, %v332
    %378 = vadd.xlane.f32.xlu0 %v377
    %v379 = vpop.xlane.xlu0 %378
    %v380 = vadd.f32 %v333, %v334
    %381 = vadd.xlane.f32.xlu0 %v380
    %v382 = vpop.xlane.xlu0 %381
    %v383 = vmul.f32 %v337, 0.00390625
    %v384 = vmul.f32 %v340, 0.00390625
    %v385 = vmul.f32 %v343, 0.00390625
    %v386 = vmul.f32 %v346, 0.00390625
    %v387 = vmul.f32 %v349, 0.00390625
    %v388 = vmul.f32 %v352, 0.00390625
    %v389 = vmul.f32 %v355, 0.00390625
    %v390 = vmul.f32 %v358, 0.00390625
    %v391 = vmul.f32 %v361, 0.00390625
    %v392 = vmul.f32 %v364, 0.00390625
    %v393 = vmul.f32 %v367, 0.00390625
    %v394 = vmul.f32 %v370, 0.00390625
    %v395 = vmul.f32 %v373, 0.00390625
    %v396 = vmul.f32 %v376, 0.00390625
    %v397 = vmul.f32 %v379, 0.00390625
    %v398 = vmul.f32 %v382, 0.00390625
    %v399 = vmul.f32 %v287, %v287
    %v400 = vmul.f32 %v288, %v288
    %v401 = vmul.f32 %v289, %v289
    %v402 = vmul.f32 %v290, %v290
    %v403 = vmul.f32 %v291, %v291
    %v404 = vmul.f32 %v292, %v292
    %v405 = vmul.f32 %v293, %v293
    %v406 = vmul.f32 %v294, %v294
    %v407 = vmul.f32 %v295, %v295
    %v408 = vmul.f32 %v296, %v296
    %v409 = vmul.f32 %v297, %v297
    %v410 = vmul.f32 %v298, %v298
    %v411 = vmul.f32 %v299, %v299
    %v412 = vmul.f32 %v300, %v300
    %v413 = vmul.f32 %v301, %v301
    %v414 = vmul.f32 %v302, %v302
    %v415 = vsub.f32 %v383, %v399
    %v416 = vsub.f32 %v384, %v400
    %v417 = vsub.f32 %v385, %v401
    %v418 = vsub.f32 %v386, %v402
    %v419 = vsub.f32 %v387, %v403
    %v420 = vsub.f32 %v388, %v404
    %v421 = vsub.f32 %v389, %v405
    %v422 = vsub.f32 %v390, %v406
    %v423 = vsub.f32 %v391, %v407
    %v424 = vsub.f32 %v392, %v408
    %v425 = vsub.f32 %v393, %v409
    %v426 = vsub.f32 %v394, %v410
    %v427 = vsub.f32 %v395, %v411
    %v428 = vsub.f32 %v396, %v412
    %v429 = vsub.f32 %v397, %v413
    %v430 = vsub.f32 %v398, %v414
    %v431 = vmax.f32 %v415, 0.0
    %v432 = vmax.f32 %v416, 0.0
    %v433 = vmax.f32 %v417, 0.0
    %v434 = vmax.f32 %v418, 0.0
    %v435 = vmax.f32 %v419, 0.0
    %v436 = vmax.f32 %v420, 0.0
    %v437 = vmax.f32 %v421, 0.0
    %v438 = vmax.f32 %v422, 0.0
    %v439 = vmax.f32 %v423, 0.0
    %v440 = vmax.f32 %v424, 0.0
    %v441 = vmax.f32 %v425, 0.0
    %v442 = vmax.f32 %v426, 0.0
    %v443 = vmax.f32 %v427, 0.0
    %v444 = vmax.f32 %v428, 0.0
    %v445 = vmax.f32 %v429, 0.0
    %v446 = vmax.f32 %v430, 0.0
    %v447 = vld [vmem:[%s2] sm:$0xff]
    %v448 = vld [vmem:[%s2 + $0x8] sm:$0xff]
    %v449 = vld [vmem:[%s2 + $0x10] sm:$0xff]
    %v450 = vld [vmem:[%s2 + $0x18] sm:$0xff]
    %v451 = vld [vmem:[%s2 + $0x20] sm:$0xff]
    %v452 = vld [vmem:[%s2 + $0x28] sm:$0xff]
    %v453 = vld [vmem:[%s2 + $0x30] sm:$0xff]
    %v454 = vld [vmem:[%s2 + $0x38] sm:$0xff]
    %v455 = vld [vmem:[%s2 + $0x40] sm:$0xff]
    %v456 = vld [vmem:[%s2 + $0x48] sm:$0xff]
    %v457 = vld [vmem:[%s2 + $0x50] sm:$0xff]
    %v458 = vld [vmem:[%s2 + $0x58] sm:$0xff]
    %v459 = vld [vmem:[%s2 + $0x60] sm:$0xff]
    %v460 = vld [vmem:[%s2 + $0x68] sm:$0xff]
    %v461 = vld [vmem:[%s2 + $0x70] sm:$0xff]
    %v462 = vld [vmem:[%s2 + $0x78] sm:$0xff]
    %v463 = vadd.f32 %v431, 1e-05
    %v464 = vadd.f32 %v432, 1e-05
    %v465 = vadd.f32 %v433, 1e-05
    %v466 = vadd.f32 %v434, 1e-05
    %v467 = vadd.f32 %v435, 1e-05
    %v468 = vadd.f32 %v436, 1e-05
    %v469 = vadd.f32 %v437, 1e-05
    %v470 = vadd.f32 %v438, 1e-05
    %v471 = vadd.f32 %v439, 1e-05
    %v472 = vadd.f32 %v440, 1e-05
    %v473 = vadd.f32 %v441, 1e-05
    %v474 = vadd.f32 %v442, 1e-05
    %v475 = vadd.f32 %v443, 1e-05
    %v476 = vadd.f32 %v444, 1e-05
    %v477 = vadd.f32 %v445, 1e-05
    %v478 = vadd.f32 %v446, 1e-05
    %v479 = vrsqrt.pop %v463
    %v480 = vrsqrt.pop %v464
    %v481 = vrsqrt.pop %v465
    %v482 = vrsqrt.pop %v466
    %v483 = vrsqrt.pop %v467
    %v484 = vrsqrt.pop %v468
    %v485 = vrsqrt.pop %v469
    %v486 = vrsqrt.pop %v470
    %v487 = vrsqrt.pop %v471
    %v488 = vrsqrt.pop %v472
    %v489 = vrsqrt.pop %v473
    %v490 = vrsqrt.pop %v474
    %v491 = vrsqrt.pop %v475
    %v492 = vrsqrt.pop %v476
    %v493 = vrsqrt.pop %v477
    %v494 = vrsqrt.pop %v478
    %v495 = vmul.f32 %v447, %v479
    %v496 = vmul.f32 %v448, %v480
    %v497 = vmul.f32 %v449, %v481
    %v498 = vmul.f32 %v450, %v482
    %v499 = vmul.f32 %v451, %v483
    %v500 = vmul.f32 %v452, %v484
    %v501 = vmul.f32 %v453, %v485
    %v502 = vmul.f32 %v454, %v486
    %v503 = vmul.f32 %v455, %v487
    %v504 = vmul.f32 %v456, %v488
    %v505 = vmul.f32 %v457, %v489
    %v506 = vmul.f32 %v458, %v490
    %v507 = vmul.f32 %v459, %v491
    %v508 = vmul.f32 %v460, %v492
    %v509 = vmul.f32 %v461, %v493
    %v510 = vmul.f32 %v462, %v494
    %v511 = vmul.f32 %v287, %v495
    %v512 = vmul.f32 %v288, %v496
    %v513 = vmul.f32 %v289, %v497
    %v514 = vmul.f32 %v290, %v498
    %v515 = vmul.f32 %v291, %v499
    %v516 = vmul.f32 %v292, %v500
    %v517 = vmul.f32 %v293, %v501
    %v518 = vmul.f32 %v294, %v502
    %v519 = vmul.f32 %v295, %v503
    %v520 = vmul.f32 %v296, %v504
    %v521 = vmul.f32 %v297, %v505
    %v522 = vmul.f32 %v298, %v506
    %v523 = vmul.f32 %v299, %v507
    %v524 = vmul.f32 %v300, %v508
    %v525 = vmul.f32 %v301, %v509
    %v526 = vmul.f32 %v302, %v510
    %543 = vrot.lane.b32.xlu0 %v511, 1
    %v544 = vpop.permute.xlu0 %543
    %545 = vrot.lane.b32.xlu0 %v512, 1
    %v546 = vpop.permute.xlu0 %545
    %547 = vrot.lane.b32.xlu0 %v513, 1
    %v548 = vpop.permute.xlu0 %547
    %549 = vrot.lane.b32.xlu0 %v514, 1
    %v550 = vpop.permute.xlu0 %549
    %551 = vrot.lane.b32.xlu0 %v515, 1
    %v552 = vpop.permute.xlu0 %551
    %553 = vrot.lane.b32.xlu0 %v516, 1
    %v554 = vpop.permute.xlu0 %553
    %555 = vrot.lane.b32.xlu0 %v517, 1
    %v556 = vpop.permute.xlu0 %555
    %557 = vrot.lane.b32.xlu0 %v518, 1
    %v558 = vpop.permute.xlu0 %557
    %559 = vrot.lane.b32.xlu0 %v519, 1
    %v560 = vpop.permute.xlu0 %559
    %561 = vrot.lane.b32.xlu0 %v520, 1
    %v562 = vpop.permute.xlu0 %561
    %563 = vrot.lane.b32.xlu0 %v521, 1
    %v564 = vpop.permute.xlu0 %563
    %565 = vrot.lane.b32.xlu0 %v522, 1
    %v566 = vpop.permute.xlu0 %565
    %567 = vrot.lane.b32.xlu0 %v523, 1
    %v568 = vpop.permute.xlu0 %567
    %569 = vrot.lane.b32.xlu0 %v524, 1
    %v570 = vpop.permute.xlu0 %569
    %571 = vrot.lane.b32.xlu0 %v525, 1
    %v572 = vpop.permute.xlu0 %571
    %573 = vrot.lane.b32.xlu0 %v526, 1
    %v574 = vpop.permute.xlu0 %573
    %v591 = vsub.f32 %v447, %v544
    %v592 = vsub.f32 %v448, %v546
    %v593 = vsub.f32 %v449, %v548
    %v594 = vsub.f32 %v450, %v550
    %v595 = vsub.f32 %v451, %v552
    %v596 = vsub.f32 %v452, %v554
    %v597 = vsub.f32 %v453, %v556
    %v598 = vsub.f32 %v454, %v558
    %v599 = vsub.f32 %v455, %v560
    %v600 = vsub.f32 %v456, %v562
    %v601 = vsub.f32 %v457, %v564
    %v602 = vsub.f32 %v458, %v566
    %v603 = vsub.f32 %v459, %v568
    %v604 = vsub.f32 %v460, %v570
    %v605 = vsub.f32 %v461, %v572
    %v606 = vsub.f32 %v462, %v574
    %608 = vset.pattern.permute.xlu0 0
    %609 = vperm.xlu0 %608, %v495
    %v610 = vpop.permute.xlu0 %609
    %613 = vset.pattern.permute.xlu0 0
    %614 = vperm.xlu0 %613, %v496
    %v615 = vpop.permute.xlu0 %614
    %618 = vset.pattern.permute.xlu0 0
    %619 = vperm.xlu0 %618, %v497
    %v620 = vpop.permute.xlu0 %619
    %623 = vset.pattern.permute.xlu0 0
    %624 = vperm.xlu0 %623, %v498
    %v625 = vpop.permute.xlu0 %624
    %628 = vset.pattern.permute.xlu0 0
    %629 = vperm.xlu0 %628, %v499
    %v630 = vpop.permute.xlu0 %629
    %633 = vset.pattern.permute.xlu0 0
    %634 = vperm.xlu0 %633, %v500
    %v635 = vpop.permute.xlu0 %634
    %638 = vset.pattern.permute.xlu0 0
    %639 = vperm.xlu0 %638, %v501
    %v640 = vpop.permute.xlu0 %639
    %643 = vset.pattern.permute.xlu0 0
    %644 = vperm.xlu0 %643, %v502
    %v645 = vpop.permute.xlu0 %644
    %648 = vset.pattern.permute.xlu0 0
    %649 = vperm.xlu0 %648, %v503
    %v650 = vpop.permute.xlu0 %649
    %653 = vset.pattern.permute.xlu0 0
    %654 = vperm.xlu0 %653, %v504
    %v655 = vpop.permute.xlu0 %654
    %658 = vset.pattern.permute.xlu0 0
    %659 = vperm.xlu0 %658, %v505
    %v660 = vpop.permute.xlu0 %659
    %663 = vset.pattern.permute.xlu0 0
    %664 = vperm.xlu0 %663, %v506
    %v665 = vpop.permute.xlu0 %664
    %668 = vset.pattern.permute.xlu0 0
    %669 = vperm.xlu0 %668, %v507
    %v670 = vpop.permute.xlu0 %669
    %673 = vset.pattern.permute.xlu0 0
    %674 = vperm.xlu0 %673, %v508
    %v675 = vpop.permute.xlu0 %674
    %678 = vset.pattern.permute.xlu0 0
    %679 = vperm.xlu0 %678, %v509
    %v680 = vpop.permute.xlu0 %679
    %683 = vset.pattern.permute.xlu0 0
    %684 = vperm.xlu0 %683, %v510
    %v685 = vpop.permute.xlu0 %684
    %v687 = vmul.f32 %v145, %v610
    %v688 = vmul.f32 %v147, %v610
    %v689 = vmul.f32 %v151, %v615
    %v690 = vmul.f32 %v153, %v615
    %v691 = vmul.f32 %v157, %v620
    %v692 = vmul.f32 %v159, %v620
    %v693 = vmul.f32 %v163, %v625
    %v694 = vmul.f32 %v165, %v625
    %v695 = vmul.f32 %v169, %v630
    %v696 = vmul.f32 %v171, %v630
    %v697 = vmul.f32 %v175, %v635
    %v698 = vmul.f32 %v177, %v635
    %v699 = vmul.f32 %v181, %v640
    %v700 = vmul.f32 %v183, %v640
    %v701 = vmul.f32 %v187, %v645
    %v702 = vmul.f32 %v189, %v645
    %v703 = vmul.f32 %v193, %v650
    %v704 = vmul.f32 %v195, %v650
    %v705 = vmul.f32 %v199, %v655
    %v706 = vmul.f32 %v201, %v655
    %v707 = vmul.f32 %v205, %v660
    %v708 = vmul.f32 %v207, %v660
    %v709 = vmul.f32 %v211, %v665
    %v710 = vmul.f32 %v213, %v665
    %v711 = vmul.f32 %v217, %v670
    %v712 = vmul.f32 %v219, %v670
    %v713 = vmul.f32 %v223, %v675
    %v714 = vmul.f32 %v225, %v675
    %v715 = vmul.f32 %v229, %v680
    %v716 = vmul.f32 %v231, %v680
    %v717 = vmul.f32 %v235, %v685
    %v718 = vmul.f32 %v237, %v685
    %720 = vset.pattern.permute.xlu0 1
    %721 = vperm.xlu0 %720, %v591
    %v722 = vpop.permute.xlu0 %721
    %725 = vset.pattern.permute.xlu0 1
    %726 = vperm.xlu0 %725, %v592
    %v727 = vpop.permute.xlu0 %726
    %730 = vset.pattern.permute.xlu0 1
    %731 = vperm.xlu0 %730, %v593
    %v732 = vpop.permute.xlu0 %731
    %735 = vset.pattern.permute.xlu0 1
    %736 = vperm.xlu0 %735, %v594
    %v737 = vpop.permute.xlu0 %736
    %740 = vset.pattern.permute.xlu0 1
    %741 = vperm.xlu0 %740, %v595
    %v742 = vpop.permute.xlu0 %741
    %745 = vset.pattern.permute.xlu0 1
    %746 = vperm.xlu0 %745, %v596
    %v747 = vpop.permute.xlu0 %746
    %750 = vset.pattern.permute.xlu0 1
    %751 = vperm.xlu0 %750, %v597
    %v752 = vpop.permute.xlu0 %751
    %755 = vset.pattern.permute.xlu0 1
    %756 = vperm.xlu0 %755, %v598
    %v757 = vpop.permute.xlu0 %756
    %760 = vset.pattern.permute.xlu0 1
    %761 = vperm.xlu0 %760, %v599
    %v762 = vpop.permute.xlu0 %761
    %765 = vset.pattern.permute.xlu0 1
    %766 = vperm.xlu0 %765, %v600
    %v767 = vpop.permute.xlu0 %766
    %770 = vset.pattern.permute.xlu0 1
    %771 = vperm.xlu0 %770, %v601
    %v772 = vpop.permute.xlu0 %771
    %775 = vset.pattern.permute.xlu0 1
    %776 = vperm.xlu0 %775, %v602
    %v777 = vpop.permute.xlu0 %776
    %780 = vset.pattern.permute.xlu0 1
    %781 = vperm.xlu0 %780, %v603
    %v782 = vpop.permute.xlu0 %781
    %785 = vset.pattern.permute.xlu0 1
    %786 = vperm.xlu0 %785, %v604
    %v787 = vpop.permute.xlu0 %786
    %790 = vset.pattern.permute.xlu0 1
    %791 = vperm.xlu0 %790, %v605
    %v792 = vpop.permute.xlu0 %791
    %795 = vset.pattern.permute.xlu0 1
    %796 = vperm.xlu0 %795, %v606
    %v797 = vpop.permute.xlu0 %796
    %v799 = vadd.f32 %v687, %v722
    %v800 = vadd.f32 %v688, %v722
    %v801 = vadd.f32 %v689, %v727
    %v802 = vadd.f32 %v690, %v727
    %v803 = vadd.f32 %v691, %v732
    %v804 = vadd.f32 %v692, %v732
    %v805 = vadd.f32 %v693, %v737
    %v806 = vadd.f32 %v694, %v737
    %v807 = vadd.f32 %v695, %v742
    %v808 = vadd.f32 %v696, %v742
    %v809 = vadd.f32 %v697, %v747
    %v810 = vadd.f32 %v698, %v747
    %v811 = vadd.f32 %v699, %v752
    %v812 = vadd.f32 %v700, %v752
    %v813 = vadd.f32 %v701, %v757
    %v814 = vadd.f32 %v702, %v757
    %v815 = vadd.f32 %v703, %v762
    %v816 = vadd.f32 %v704, %v762
    %v817 = vadd.f32 %v705, %v767
    %v818 = vadd.f32 %v706, %v767
    %v819 = vadd.f32 %v707, %v772
    %v820 = vadd.f32 %v708, %v772
    %v821 = vadd.f32 %v709, %v777
    %v822 = vadd.f32 %v710, %v777
    %v823 = vadd.f32 %v711, %v782
    %v824 = vadd.f32 %v712, %v782
    %v825 = vadd.f32 %v713, %v787
    %v826 = vadd.f32 %v714, %v787
    %v827 = vadd.f32 %v715, %v792
    %v828 = vadd.f32 %v716, %v792
    %v829 = vadd.f32 %v717, %v797
    %v830 = vadd.f32 %v718, %v797
    %v831 = vmax.f32 %v799, 0.0
    %v832 = vmax.f32 %v800, 0.0
    %v833 = vmax.f32 %v801, 0.0
    %v834 = vmax.f32 %v802, 0.0
    %v835 = vmax.f32 %v803, 0.0
    %v836 = vmax.f32 %v804, 0.0
    %v837 = vmax.f32 %v805, 0.0
    %v838 = vmax.f32 %v806, 0.0
    %v839 = vmax.f32 %v807, 0.0
    %v840 = vmax.f32 %v808, 0.0
    %v841 = vmax.f32 %v809, 0.0
    %v842 = vmax.f32 %v810, 0.0
    %v843 = vmax.f32 %v811, 0.0
    %v844 = vmax.f32 %v812, 0.0
    %v845 = vmax.f32 %v813, 0.0
    %v846 = vmax.f32 %v814, 0.0
    %v847 = vmax.f32 %v815, 0.0
    %v848 = vmax.f32 %v816, 0.0
    %v849 = vmax.f32 %v817, 0.0
    %v850 = vmax.f32 %v818, 0.0
    %v851 = vmax.f32 %v819, 0.0
    %v852 = vmax.f32 %v820, 0.0
    %v853 = vmax.f32 %v821, 0.0
    %v854 = vmax.f32 %v822, 0.0
    %v855 = vmax.f32 %v823, 0.0
    %v856 = vmax.f32 %v824, 0.0
    %v857 = vmax.f32 %v825, 0.0
    %v858 = vmax.f32 %v826, 0.0
    %v859 = vmax.f32 %v827, 0.0
    %v860 = vmax.f32 %v828, 0.0
    %v861 = vmax.f32 %v829, 0.0
    %v862 = vmax.f32 %v830, 0.0
    %863 = vst [vmem:[#allocation5] sm:$0xff] %v831
    %864 = vst [vmem:[#allocation5 + $0x8] sm:$0xff] %v833
    %865 = vst [vmem:[#allocation5 + $0x10] sm:$0xff] %v835
    %866 = vst [vmem:[#allocation5 + $0x18] sm:$0xff] %v837
    %867 = vst [vmem:[#allocation5 + $0x20] sm:$0xff] %v839
    %868 = vst [vmem:[#allocation5 + $0x28] sm:$0xff] %v841
    %869 = vst [vmem:[#allocation5 + $0x30] sm:$0xff] %v843
    %870 = vst [vmem:[#allocation5 + $0x38] sm:$0xff] %v845
    %871 = vst [vmem:[#allocation5 + $0x40] sm:$0xff] %v847
    %872 = vst [vmem:[#allocation5 + $0x48] sm:$0xff] %v849
    %873 = vst [vmem:[#allocation5 + $0x50] sm:$0xff] %v851
    %874 = vst [vmem:[#allocation5 + $0x58] sm:$0xff] %v853
    %875 = vst [vmem:[#allocation5 + $0x60] sm:$0xff] %v855
    %876 = vst [vmem:[#allocation5 + $0x68] sm:$0xff] %v857
    %877 = vst [vmem:[#allocation5 + $0x70] sm:$0xff] %v859
    %878 = vst [vmem:[#allocation5 + $0x78] sm:$0xff] %v861
    %s879 = scalar_lea.vmem [#allocation5], 128
    %880 = vst [vmem:[%s879] sm:$0xff] %v832
    %881 = vst [vmem:[%s879 + $0x8] sm:$0xff] %v834
    %882 = vst [vmem:[%s879 + $0x10] sm:$0xff] %v836
    %883 = vst [vmem:[%s879 + $0x18] sm:$0xff] %v838
    %884 = vst [vmem:[%s879 + $0x20] sm:$0xff] %v840
    %885 = vst [vmem:[%s879 + $0x28] sm:$0xff] %v842
    %886 = vst [vmem:[%s879 + $0x30] sm:$0xff] %v844
    %887 = vst [vmem:[%s879 + $0x38] sm:$0xff] %v846
    %888 = vst [vmem:[%s879 + $0x40] sm:$0xff] %v848
    %889 = vst [vmem:[%s879 + $0x48] sm:$0xff] %v850
    %890 = vst [vmem:[%s879 + $0x50] sm:$0xff] %v852
    %891 = vst [vmem:[%s879 + $0x58] sm:$0xff] %v854
    %892 = vst [vmem:[%s879 + $0x60] sm:$0xff] %v856
    %893 = vst [vmem:[%s879 + $0x68] sm:$0xff] %v858
    %894 = vst [vmem:[%s879 + $0x70] sm:$0xff] %v860
    %895 = vst [vmem:[%s879 + $0x78] sm:$0xff] %v862
    // Predicated region
    $region18: #{tpu_custom_call.1} parent=1 // pred_check
      _
    $region19: #{tpu_custom_call.1} parent=1 // pred_check_branch
      %897 = sbr.rel (0) target = $region21
    $region20: #{tpu_custom_call.1} parent=1 // pred_region
      %s899 = ssub.s32 4096, 4096
      %900 = vsyncadd [#allocation4], %s899
      %s901 = sshll.u32 [#allocation5], 4
      %s902 = int_to_ptr.vmem [resolvable:$true] %s901
      %907 = dma.vmem_to_hbm [thread:$0]  %s902, 4096, %s3, [#allocation4], 128, 128, 8
    $region21: #{tpu_custom_call.1} parent=1 // pred_fallthru
      _
    // Predicated region
    $region22: #{tpu_custom_call.1} parent=1 // pred_check
      _
    $region23: #{tpu_custom_call.1} parent=1 // pred_check_branch
      %909 = sbr.rel (0) target = $region25
    $region24: #{tpu_custom_call.1} parent=1 // pred_region
      %910 = dma.done [#allocation4], 4096
    $region25: #{tpu_custom_call.1} parent=1 // pred_fallthru
      _
    %911 = vsyncpa [#allocation3], 1
    %912 = vsyncpa [#allocation4], 1

</llo_original>
